<compile_context>
chip_gen: v7x
topology: tpu7x:2x2x1
jax: 0.10.0
libtpu: 0.0.40
codegen_flags: <defaults>
</compile_context>

<pallas_src>
import functools

import numpy as np
import jax
import jax.numpy as jnp
from jax import lax
from jax.experimental import pallas as pl
from jax.experimental.pallas import tpu as pltpu


def _round_up(x, m):
    return ((x + m - 1) // m) * m


# --------------------------------------------------------------------------
# Kernel 1: normed_weight = sigmoid(pooled @ W^T + b), tiled over M.
#   w_ref      : VMEM f32 [1, H]      (resident across grid)
#   b_ref      : SMEM f32 [1]
#   pooled_ref : VMEM     [TM, H]     (original dtype, cast in-kernel)
#   nw_ref     : VMEM f32 [TM, 1]
# --------------------------------------------------------------------------
def _weight_kernel(w_ref, b_ref, pooled_ref, nw_ref):
    x = pooled_ref[...].astype(jnp.float32)                   # [TM, H]
    w = w_ref[...]                                            # [1, H]
    y = jnp.sum(x * w, axis=-1, keepdims=True) + b_ref[0]     # [TM, 1]
    nw_ref[...] = 1.0 / (1.0 + jnp.exp(-y))                   # sigmoid (f32 exact)


# --------------------------------------------------------------------------
# Kernel 2: per-passage adjacency via one-hot MXU matmul, K-chunked.
#   rows_ref : VMEM int32 [1, 1, KC]   pair rows for this passage / K-chunk
#   cols_ref : VMEM int32 [1, KC, 1]   pair cols
#   nw_ref   : VMEM f32   [1, KC, 1]   edge weights
#   adj_ref  : VMEM f32   [1, Ls, Ll]  output block (accumulated across kc)
# Padding slots carry row = col = -1, so they contribute exactly zero.
# --------------------------------------------------------------------------
def _adj_kernel(rows_ref, cols_ref, nw_ref, adj_ref, *, epsilon):
    kc = pl.program_id(1)
    ls, ll = adj_ref.shape[1], adj_ref.shape[2]
    kcn = rows_ref.shape[-1]

    @pl.when(kc == 0)
    def _():
        # torch.ones(...) + epsilon base value for every cell.
        adj_ref[0] = jnp.full((ls, ll), 1.0 + epsilon, dtype=jnp.float32)

    rows = rows_ref[0]                                        # (1, KC)  lanes
    cols = cols_ref[0]                                        # (KC, 1)  sublanes
    nw = nw_ref[0]                                            # (KC, 1)

    # Row one-hots transposed: r_t[i, j] = 1 iff pair j has row i.
    r_t = (lax.broadcasted_iota(jnp.int32, (ls, kcn), 0) == rows).astype(jnp.float32)
    # Col one-hots scaled by (nw - 1): c_s[j, c] = (nw_j - 1) iff pair j has col c.
    c_s = (lax.broadcasted_iota(jnp.int32, (kcn, ll), 1) == cols).astype(jnp.float32)
    c_s = c_s * (nw - 1.0)

    # adj[i, c] += sum_j r_t[i, j] * c_s[j, c]  ->  (nw_j - 1) at each pair cell.
    adj_ref[0] += jnp.dot(r_t, c_s,
                          preferred_element_type=jnp.float32,
                          precision=lax.Precision.HIGHEST)


# --------------------------------------------------------------------------
# Host wrapper reproducing FormAdjcent.forward
# --------------------------------------------------------------------------
def form_adjacent(pooled_output, pairs_list, passage_length, pairs_num,
                  weight, bias, epsilon=1e-4):
    M, H = pooled_output.shape

    # ---------------- Kernel 1: edge weights, tiled over M ----------------
    TM = min(512, _round_up(max(M, 1), 128))
    Mpad = _round_up(max(M, 1), TM)
    pooled_p = jnp.pad(pooled_output, ((0, Mpad - M), (0, 0)))

    nw_full = pl.pallas_call(
        _weight_kernel,
        out_shape=jax.ShapeDtypeStruct((Mpad, 1), jnp.float32),
        grid=(Mpad // TM,),
        in_specs=[
            pl.BlockSpec((1, H), lambda i: (0, 0)),                     # weight (resident)
            pl.BlockSpec(memory_space=pltpu.MemorySpace.SMEM),          # bias scalar
            pl.BlockSpec((TM, H), lambda i: (i, 0)),                    # pooled tile
        ],
        out_specs=pl.BlockSpec((TM, 1), lambda i: (i, 0)),
        compiler_params=pltpu.CompilerParams(dimension_semantics=("parallel",)),
    )(weight.reshape(1, H).astype(jnp.float32),
      bias.reshape(1).astype(jnp.float32),
      pooled_p)

    # ---------------- Kernel 2: adjacency matrices ------------------------
    P = len(passage_length)
    Lmax = int(max(passage_length))
    Ls = _round_up(max(Lmax, 1), 8)        # sublane-aligned rows
    Ll = _round_up(max(Lmax, 1), 128)      # lane-dense columns (unmasked stores)

    Kmax = int(max(pairs_num)) if len(pairs_num) else 0
    KC = min(512, _round_up(max(Kmax, 1), 128))     # pair-chunk (contraction tile)
    Kpad = _round_up(max(Kmax, 1), KC)
    Kchunks = Kpad // KC

    # Host-side layout of pair indices / gather indices, padded with -1 so
    # padding slots contribute zero.  Duplicate (r, c) pairs within a passage
    # are deduplicated keeping the LAST index -> matches torch last-write-wins.
    rows_np = np.full((P, 1, Kpad), -1, dtype=np.int32)
    cols_np = np.full((P, Kpad, 1), -1, dtype=np.int32)
    gidx_np = np.zeros((P, Kpad), dtype=np.int32)

    ptr = 0
    for pi, (k, _length) in enumerate(zip(pairs_num, passage_length)):
        last = {}
        for j in range(k):
            r, c = pairs_list[ptr + j]
            last[(int(r), int(c))] = ptr + j
        for slot, ((r, c), g) in enumerate(last.items()):
            rows_np[pi, 0, slot] = r
            cols_np[pi, slot, 0] = c
            gidx_np[pi, slot] = g
        ptr += k

    # Tiny XLA gather: edge weight per (passage, pair-slot), sublane-oriented.
    nw_pk = jnp.take(nw_full, jnp.asarray(gidx_np), axis=0)   # (P, Kpad, 1) f32

    adj_padded = pl.pallas_call(
        functools.partial(_adj_kernel, epsilon=float(epsilon)),
        out_shape=jax.ShapeDtypeStruct((P, Ls, Ll), jnp.float32),
        grid=(P, Kchunks),
        in_specs=[
            pl.BlockSpec((1, 1, KC), lambda p, kc: (p, 0, kc)),   # rows
            pl.BlockSpec((1, KC, 1), lambda p, kc: (p, kc, 0)),   # cols
            pl.BlockSpec((1, KC, 1), lambda p, kc: (p, kc, 0)),   # nw
        ],
        out_specs=pl.BlockSpec((1, Ls, Ll), lambda p, kc: (p, 0, 0)),
        compiler_params=pltpu.CompilerParams(
            dimension_semantics=("parallel", "arbitrary")),
    )(jnp.asarray(rows_np), jnp.asarray(cols_np), nw_pk)

    # Ragged list-of-[n_i, n_i] output has no Pallas equivalent; slice the
    # padded slab host-side.
    adjacent_matrix_list = [
        adj_padded[i, :length, :length] for i, length in enumerate(passage_length)
    ]
    return adjacent_matrix_list, nw_full[:M, 0]


# --------------------------------------------------------------------------
# Pure-numpy reference mirroring the PyTorch module.
# --------------------------------------------------------------------------
def _reference(pooled, W, b, pairs_list, passage_length, pairs_num, epsilon=1e-4):
    y = pooled @ W.T + b                              # [M, 1]
    nw = (1.0 / (1.0 + np.exp(-y))).squeeze()         # [M]
    out, ptr = [], 0
    for comb_num, length in zip(pairs_num, passage_length):
        passage_pairs_i = pairs_list[ptr:ptr + comb_num]
        A = np.ones((length, length), dtype=np.float32)
        for idx, pair in enumerate(passage_pairs_i):
            A[pair[0], pair[1]] = nw[ptr + idx]
        A = A + epsilon
        out.append(A)
        ptr += comb_num
    return out


if __name__ == "__main__":
    # Small, deterministic synthetic problem.
    H = 32
    passage_length = [2, 3]                 # two passages
    pairs_num = [1, 3]                      # pairs per passage
    pairs_list = [(0, 1), (0, 1), (0, 2), (1, 2)]
    M = sum(pairs_num)                      # total sentence pairs = 4

    key = jax.random.PRNGKey(0)
    k1, k2, k3 = jax.random.split(key, 3)
    pooled_output = jax.random.normal(k1, (M, H), dtype=jnp.float32)
    weight = jax.random.normal(k2, (1, H), dtype=jnp.float32) * 0.1   # nn.Linear(H, 1).weight
    bias = jax.random.normal(k3, (1,), dtype=jnp.float32) * 0.1       # nn.Linear(H, 1).bias

    adj_list, nw = form_adjacent(pooled_output, pairs_list, passage_length,
                                 pairs_num, weight, bias, epsilon=1e-4)
    adj_list = [jax.block_until_ready(a) for a in adj_list]
    nw = jax.block_until_ready(nw)

    # Correctness check vs numpy reference.
    ref_list = _reference(np.asarray(pooled_output), np.asarray(weight),
                          np.asarray(bias), pairs_list, passage_length,
                          pairs_num, epsilon=1e-4)
    for a, r in zip(adj_list, ref_list):
        np.testing.assert_allclose(np.asarray(a), r, atol=1e-4, rtol=1e-4)

    assert adj_list[0].shape == (2, 2)
    assert adj_list[1].shape == (3, 3)

    print("KERNEL_OK")
</pallas_src>

<mosaic_0001>
module attributes {stable_mosaic.version = 11 : i64} {
  func.func @_weight_kernel(%arg0: i32, %arg1: memref<1x32xf32, #tpu.memory_space<vmem>>, %arg2: memref<1xf32, #tpu.memory_space<smem>>, %arg3: memref<128x32xf32, #tpu.memory_space<vmem>>, %arg4: memref<128x1xf32, #tpu.memory_space<vmem>>) attributes {dimension_semantics = [#tpu.dimension_semantics<parallel>], iteration_bounds = array<i64: 1>, scalar_prefetch = 0 : i64, scratch_operands = 0 : i64, tpu.core_type = #tpu.core_type<tc>, window_params = [{pipeline_mode = #tpu.pipeline_mode<synchronous>, transform_indices = @transform_0, window_bounds = array<i64: 1, 32>}, {transform_indices = @transform_1, window_bounds = array<i64: 1>}, {transform_indices = @transform_2, window_bounds = array<i64: 128, 32>}, {transform_indices = @transform_3, window_bounds = array<i64: 128, 1>}]} {
    %c0 = arith.constant 0 : index
    %c0_0 = arith.constant 0 : index
    %0 = vector.load %arg3[%c0, %c0_0] : memref<128x32xf32, #tpu.memory_space<vmem>>, vector<128x32xf32>
    %c0_1 = arith.constant 0 : index
    %c0_2 = arith.constant 0 : index
    %1 = vector.load %arg1[%c0_1, %c0_2] : memref<1x32xf32, #tpu.memory_space<vmem>>, vector<1x32xf32>
    %2 = vector.broadcast %1 : vector<1x32xf32> to vector<128x32xf32>
    %3 = arith.mulf %0, %2 : vector<128x32xf32>
    %cst = arith.constant dense<0.000000e+00> : vector<128xf32>
    %4 = vector.multi_reduction <add>, %3, %cst [1] : vector<128x32xf32> to vector<128xf32>
    %5 = vector.shape_cast %4 : vector<128xf32> to vector<128x1xf32>
    %c0_3 = arith.constant 0 : index
    %6 = memref.load %arg2[%c0_3] : memref<1xf32, #tpu.memory_space<smem>>
    %7 = vector.broadcast %6 : f32 to vector<128x1xf32>
    %8 = arith.addf %5, %7 : vector<128x1xf32>
    %cst_4 = arith.constant 0.000000e+00 : f32
    %9 = vector.broadcast %cst_4 : f32 to vector<128x1xf32>
    %10 = arith.subf %9, %8 : vector<128x1xf32>
    %11 = math.exp %10 : vector<128x1xf32>
    %cst_5 = arith.constant 1.000000e+00 : f32
    %12 = vector.broadcast %cst_5 : f32 to vector<128x1xf32>
    %13 = arith.addf %12, %11 : vector<128x1xf32>
    %cst_6 = arith.constant 1.000000e+00 : f32
    %14 = vector.broadcast %cst_6 : f32 to vector<128x1xf32>
    %15 = arith.divf %14, %13 : vector<128x1xf32>
    %c0_7 = arith.constant 0 : index
    %c0_8 = arith.constant 0 : index
    %16 = vector.load %arg4[%c0_7, %c0_8] : memref<128x1xf32, #tpu.memory_space<vmem>>, vector<128x1xf32>
    tpu.vector_store %arg4[%c0_7, %c0_8], %15 {strides = array<i32>} : memref<128x1xf32, #tpu.memory_space<vmem>>, vector<128x1xf32>,
    return
  }
  func.func @transform_0(%arg0: i32) -> (i32, i32) {
    %c0_i32 = arith.constant 0 : i32
    %c0_i32_0 = arith.constant 0 : i32
    %c0_i32_1 = arith.constant 0 : i32
    return %c0_i32, %c0_i32_0 : i32, i32
  }
  func.func @transform_1(%arg0: i32) -> i32 {
    %c0_i32 = arith.constant 0 : i32
    %c0_i32_0 = arith.constant 0 : i32
    return %c0_i32 : i32
  }
  func.func @transform_2(%arg0: i32) -> (i32, i32) {
    %c0_i32 = arith.constant 0 : i32
    %c0_i32_0 = arith.constant 0 : i32
    return %arg0, %c0_i32 : i32, i32
  }
  func.func @transform_3(%arg0: i32) -> (i32, i32) {
    %c0_i32 = arith.constant 0 : i32
    %c0_i32_0 = arith.constant 0 : i32
    return %arg0, %c0_i32 : i32, i32
  }
}

</mosaic_0001>

<llo_original>
// kernel: tpu_custom_call.1
$region0: #{tpu_custom_call.1}
  #allocation0 [shape = 'u32[]', space=smem, size = 0x4, offset = 0x4, fixed_abs, tag = 'smem constant byte address 0x4 - core index']
  #allocation1 [shape = 'u32[144,128]{1,0:T(1,128)}', space=vmem, size = 0x12000, scoped, tag = 'internal scratch']
  #allocation2 [shape = 'f32[1]{0:T(128)S(6)}', space=smem, size = 0x200, scoped, tag = 'scoped memory for tpu_custom_call.1']
  %s0 = inlined_call_operand.vmem [shape: f32[1,32], index: 0, kind: input, shape index: {}]
  %s1 = inlined_call_operand.<no memory space> [shape: f32[1], index: 1, kind: input, shape index: {}]
  %s2 = inlined_call_operand.vmem [shape: f32[128,32], index: 2, kind: input, shape index: {}]
  %s3 = inlined_call_operand.vmem [shape: f32[128,1], index: 3, kind: output, shape index: {}]
  %s4 = sld [smem:[#allocation0]]
  $region22: #{tpu_custom_call.1} parent=0
    _
  %s6 = ssub.s32 1, %s4
  %s7 = scalar_select 0, %s6, %s4
  %8 = sst [smem:[#allocation2]] %s1
  // Predicated region
  $region2: #{tpu_custom_call.1} parent=0 // pred_check
    _
  $region3: #{tpu_custom_call.1} parent=0 // pred_check_branch
    %10 = sbr.rel (0) target = $region5
  $region4: #{tpu_custom_call.1} parent=0 // pred_region
    _
  $region5: #{tpu_custom_call.1} parent=0 // pred_fallthru
    _
  // Predicated region
  $region6: #{tpu_custom_call.1} parent=0 // pred_check
    _
  $region7: #{tpu_custom_call.1} parent=0 // pred_check_branch
    %12 = sbr.rel (0) target = $region9
  $region8: #{tpu_custom_call.1} parent=0 // pred_region
    _
  $region9: #{tpu_custom_call.1} parent=0 // pred_fallthru
    _
  // Predicated region
  $region10: #{tpu_custom_call.1} parent=0 // pred_check
    _
  $region11: #{tpu_custom_call.1} parent=0 // pred_check_branch
    %14 = sbr.rel (0) target = $region13
  $region12: #{tpu_custom_call.1} parent=0 // pred_region
    _
  $region13: #{tpu_custom_call.1} parent=0 // pred_fallthru
    _
  %v15 = vld [vmem:[%s2] sm:$0xff]
  %v16 = vld [vmem:[%s2 + $0x8] sm:$0xff]
  %v17 = vld [vmem:[%s2 + $0x10] sm:$0xff]
  %v18 = vld [vmem:[%s2 + $0x18] sm:$0xff]
  %v19 = vld [vmem:[%s2 + $0x20] sm:$0xff]
  %v20 = vld [vmem:[%s2 + $0x28] sm:$0xff]
  %v21 = vld [vmem:[%s2 + $0x30] sm:$0xff]
  %v22 = vld [vmem:[%s2 + $0x38] sm:$0xff]
  %v23 = vld [vmem:[%s2 + $0x40] sm:$0xff]
  %v24 = vld [vmem:[%s2 + $0x48] sm:$0xff]
  %v25 = vld [vmem:[%s2 + $0x50] sm:$0xff]
  %v26 = vld [vmem:[%s2 + $0x58] sm:$0xff]
  %v27 = vld [vmem:[%s2 + $0x60] sm:$0xff]
  %v28 = vld [vmem:[%s2 + $0x68] sm:$0xff]
  %v29 = vld [vmem:[%s2 + $0x70] sm:$0xff]
  %v30 = vld [vmem:[%s2 + $0x78] sm:$0xff]
  %v31 = vld [vmem:[%s0] sm:$0x1]
  %v33 = vlaneseq
  %v34 = vshrl.u32 %v33, 7
  %v35 = vsub.s32 0, %v34
  %v36 = vrot.slane %v31, %v35
  %v38 = vmul.f32 %v15, %v36
  %v39 = vmul.f32 %v16, %v36
  %v40 = vmul.f32 %v17, %v36
  %v41 = vmul.f32 %v18, %v36
  %v42 = vmul.f32 %v19, %v36
  %v43 = vmul.f32 %v20, %v36
  %v44 = vmul.f32 %v21, %v36
  %v45 = vmul.f32 %v22, %v36
  %v46 = vmul.f32 %v23, %v36
  %v47 = vmul.f32 %v24, %v36
  %v48 = vmul.f32 %v25, %v36
  %v49 = vmul.f32 %v26, %v36
  %v50 = vmul.f32 %v27, %v36
  %v51 = vmul.f32 %v28, %v36
  %v52 = vmul.f32 %v29, %v36
  %v53 = vmul.f32 %v30, %v36
  %vm54 = vcmask 261120
  %v55 = vsel %vm54, %v38, 0.0
  %56 = vadd.xlane.f32.xlu0 %v55
  %v57 = vpop.xlane.xlu0 %56
  %v58 = vsel %vm54, %v39, 0.0
  %59 = vadd.xlane.f32.xlu0 %v58
  %v60 = vpop.xlane.xlu0 %59
  %v61 = vsel %vm54, %v40, 0.0
  %62 = vadd.xlane.f32.xlu0 %v61
  %v63 = vpop.xlane.xlu0 %62
  %v64 = vsel %vm54, %v41, 0.0
  %65 = vadd.xlane.f32.xlu0 %v64
  %v66 = vpop.xlane.xlu0 %65
  %v67 = vsel %vm54, %v42, 0.0
  %68 = vadd.xlane.f32.xlu0 %v67
  %v69 = vpop.xlane.xlu0 %68
  %v70 = vsel %vm54, %v43, 0.0
  %71 = vadd.xlane.f32.xlu0 %v70
  %v72 = vpop.xlane.xlu0 %71
  %v73 = vsel %vm54, %v44, 0.0
  %74 = vadd.xlane.f32.xlu0 %v73
  %v75 = vpop.xlane.xlu0 %74
  %v76 = vsel %vm54, %v45, 0.0
  %77 = vadd.xlane.f32.xlu0 %v76
  %v78 = vpop.xlane.xlu0 %77
  %v79 = vsel %vm54, %v46, 0.0
  %80 = vadd.xlane.f32.xlu0 %v79
  %v81 = vpop.xlane.xlu0 %80
  %v82 = vsel %vm54, %v47, 0.0
  %83 = vadd.xlane.f32.xlu0 %v82
  %v84 = vpop.xlane.xlu0 %83
  %v85 = vsel %vm54, %v48, 0.0
  %86 = vadd.xlane.f32.xlu0 %v85
  %v87 = vpop.xlane.xlu0 %86
  %v88 = vsel %vm54, %v49, 0.0
  %89 = vadd.xlane.f32.xlu0 %v88
  %v90 = vpop.xlane.xlu0 %89
  %v91 = vsel %vm54, %v50, 0.0
  %92 = vadd.xlane.f32.xlu0 %v91
  %v93 = vpop.xlane.xlu0 %92
  %v94 = vsel %vm54, %v51, 0.0
  %95 = vadd.xlane.f32.xlu0 %v94
  %v96 = vpop.xlane.xlu0 %95
  %v97 = vsel %vm54, %v52, 0.0
  %98 = vadd.xlane.f32.xlu0 %v97
  %v99 = vpop.xlane.xlu0 %98
  %v100 = vsel %vm54, %v53, 0.0
  %101 = vadd.xlane.f32.xlu0 %v100
  %v102 = vpop.xlane.xlu0 %101
  %s103 = sld [smem:[#allocation2]]
  %v104 = vstv %s103
  %v105 = vadd.f32 %v57, %v104
  %v106 = vadd.f32 %v60, %v104
  %v107 = vadd.f32 %v63, %v104
  %v108 = vadd.f32 %v66, %v104
  %v109 = vadd.f32 %v69, %v104
  %v110 = vadd.f32 %v72, %v104
  %v111 = vadd.f32 %v75, %v104
  %v112 = vadd.f32 %v78, %v104
  %v113 = vadd.f32 %v81, %v104
  %v114 = vadd.f32 %v84, %v104
  %v115 = vadd.f32 %v87, %v104
  %v116 = vadd.f32 %v90, %v104
  %v117 = vadd.f32 %v93, %v104
  %v118 = vadd.f32 %v96, %v104
  %v119 = vadd.f32 %v99, %v104
  %v120 = vadd.f32 %v102, %v104
  %v121 = vsub.f32 0.0, %v105
  %v122 = vsub.f32 0.0, %v106
  %v123 = vsub.f32 0.0, %v107
  %v124 = vsub.f32 0.0, %v108
  %v125 = vsub.f32 0.0, %v109
  %v126 = vsub.f32 0.0, %v110
  %v127 = vsub.f32 0.0, %v111
  %v128 = vsub.f32 0.0, %v112
  %v129 = vsub.f32 0.0, %v113
  %v130 = vsub.f32 0.0, %v114
  %v131 = vsub.f32 0.0, %v115
  %v132 = vsub.f32 0.0, %v116
  %v133 = vsub.f32 0.0, %v117
  %v134 = vsub.f32 0.0, %v118
  %v135 = vsub.f32 0.0, %v119
  %v136 = vsub.f32 0.0, %v120
  %v137 = vmul.f32 %v121, 1.442695
  %v138 = vpow.pop %v137
  %v139 = vmul.f32 %v122, 1.442695
  %v140 = vpow.pop %v139
  %v141 = vmul.f32 %v123, 1.442695
  %v142 = vpow.pop %v141
  %v143 = vmul.f32 %v124, 1.442695
  %v144 = vpow.pop %v143
  %v145 = vmul.f32 %v125, 1.442695
  %v146 = vpow.pop %v145
  %v147 = vmul.f32 %v126, 1.442695
  %v148 = vpow.pop %v147
  %v149 = vmul.f32 %v127, 1.442695
  %v150 = vpow.pop %v149
  %v151 = vmul.f32 %v128, 1.442695
  %v152 = vpow.pop %v151
  %v153 = vmul.f32 %v129, 1.442695
  %v154 = vpow.pop %v153
  %v155 = vmul.f32 %v130, 1.442695
  %v156 = vpow.pop %v155
  %v157 = vmul.f32 %v131, 1.442695
  %v158 = vpow.pop %v157
  %v159 = vmul.f32 %v132, 1.442695
  %v160 = vpow.pop %v159
  %v161 = vmul.f32 %v133, 1.442695
  %v162 = vpow.pop %v161
  %v163 = vmul.f32 %v134, 1.442695
  %v164 = vpow.pop %v163
  %v165 = vmul.f32 %v135, 1.442695
  %v166 = vpow.pop %v165
  %v167 = vmul.f32 %v136, 1.442695
  %v168 = vpow.pop %v167
  %v169 = vadd.f32 %v138, 1.0
  %v170 = vadd.f32 %v140, 1.0
  %v171 = vadd.f32 %v142, 1.0
  %v172 = vadd.f32 %v144, 1.0
  %v173 = vadd.f32 %v146, 1.0
  %v174 = vadd.f32 %v148, 1.0
  %v175 = vadd.f32 %v150, 1.0
  %v176 = vadd.f32 %v152, 1.0
  %v177 = vadd.f32 %v154, 1.0
  %v178 = vadd.f32 %v156, 1.0
  %v179 = vadd.f32 %v158, 1.0
  %v180 = vadd.f32 %v160, 1.0
  %v181 = vadd.f32 %v162, 1.0
  %v182 = vadd.f32 %v164, 1.0
  %v183 = vadd.f32 %v166, 1.0
  %v184 = vadd.f32 %v168, 1.0
  %v185 = vrcp.pop %v169
  %v186 = vmul.f32 1.0, %v185
  %v187 = vrcp.pop %v170
  %v188 = vmul.f32 1.0, %v187
  %v189 = vrcp.pop %v171
  %v190 = vmul.f32 1.0, %v189
  %v191 = vrcp.pop %v172
  %v192 = vmul.f32 1.0, %v191
  %v193 = vrcp.pop %v173
  %v194 = vmul.f32 1.0, %v193
  %v195 = vrcp.pop %v174
  %v196 = vmul.f32 1.0, %v195
  %v197 = vrcp.pop %v175
  %v198 = vmul.f32 1.0, %v197
  %v199 = vrcp.pop %v176
  %v200 = vmul.f32 1.0, %v199
  %v201 = vrcp.pop %v177
  %v202 = vmul.f32 1.0, %v201
  %v203 = vrcp.pop %v178
  %v204 = vmul.f32 1.0, %v203
  %v205 = vrcp.pop %v179
  %v206 = vmul.f32 1.0, %v205
  %v207 = vrcp.pop %v180
  %v208 = vmul.f32 1.0, %v207
  %v209 = vrcp.pop %v181
  %v210 = vmul.f32 1.0, %v209
  %v211 = vrcp.pop %v182
  %v212 = vmul.f32 1.0, %v211
  %v213 = vrcp.pop %v183
  %v214 = vmul.f32 1.0, %v213
  %v215 = vrcp.pop %v184
  %v216 = vmul.f32 1.0, %v215
  %vm217 = vcmask 7168
  %218 = vst.msk [vmem:[%s3] sm:$0xff] %vm217, %v186
  %219 = vst.msk [vmem:[%s3 + $0x8] sm:$0xff] %vm217, %v188
  %220 = vst.msk [vmem:[%s3 + $0x10] sm:$0xff] %vm217, %v190
  %221 = vst.msk [vmem:[%s3 + $0x18] sm:$0xff] %vm217, %v192
  %222 = vst.msk [vmem:[%s3 + $0x20] sm:$0xff] %vm217, %v194
  %223 = vst.msk [vmem:[%s3 + $0x28] sm:$0xff] %vm217, %v196
  %224 = vst.msk [vmem:[%s3 + $0x30] sm:$0xff] %vm217, %v198
  %225 = vst.msk [vmem:[%s3 + $0x38] sm:$0xff] %vm217, %v200
  %226 = vst.msk [vmem:[%s3 + $0x40] sm:$0xff] %vm217, %v202
  %227 = vst.msk [vmem:[%s3 + $0x48] sm:$0xff] %vm217, %v204
  %228 = vst.msk [vmem:[%s3 + $0x50] sm:$0xff] %vm217, %v206
  %229 = vst.msk [vmem:[%s3 + $0x58] sm:$0xff] %vm217, %v208
  %230 = vst.msk [vmem:[%s3 + $0x60] sm:$0xff] %vm217, %v210
  %231 = vst.msk [vmem:[%s3 + $0x68] sm:$0xff] %vm217, %v212
  %232 = vst.msk [vmem:[%s3 + $0x70] sm:$0xff] %vm217, %v214
  %233 = vst.msk [vmem:[%s3 + $0x78] sm:$0xff] %vm217, %v216
  // Predicated region
  $region14: #{tpu_custom_call.1} parent=0 // pred_check
    _
  $region15: #{tpu_custom_call.1} parent=0 // pred_check_branch
    %235 = sbr.rel (0) target = $region17
  $region16: #{tpu_custom_call.1} parent=0 // pred_region
    _
  $region17: #{tpu_custom_call.1} parent=0 // pred_fallthru
    _
  // Predicated region
  $region18: #{tpu_custom_call.1} parent=0 // pred_check
    _
  $region19: #{tpu_custom_call.1} parent=0 // pred_check_branch
    %237 = sbr.rel (0) target = $region21
  $region20: #{tpu_custom_call.1} parent=0 // pred_region
    _
  $region21: #{tpu_custom_call.1} parent=0 // pred_fallthru
    _

</llo_original>
